<compile_context>
chip_gen: v6e
topology: v6e:2x2x1
jax: 0.10.0
libtpu: 0.0.40
codegen_flags: <defaults>
</compile_context>

<pallas_src>
import jax
import jax.numpy as jnp
from jax.experimental import pallas as pl
from jax.experimental.pallas import tpu as pltpu


_K = 256          # LUT entries (indices come from round(255*img))
_R = 16           # radix: idx = 16*hi + lo
_MAX_TILE = 4096  # lanes per grid step; ~5 MiB live VMEM -> safe on v5e/v6e/v7x


def intensity_kernel(img_ref, lut_ref, o1_ref, o2_ref, o3_ref):
    # img_ref: (C, TL)        f32  flattened pixel tile, one row per channel
    # lut_ref: (C, 3*R, R)    f32  per-channel LUT laid out [t*R + lo, hi]
    # o*_ref:  (C, TL)        f32  per-transform outputs
    C, TL = img_ref.shape

    x = img_ref[...]
    idx = jnp.clip(jnp.round(255.0 * x), 0.0, float(_K - 1)).astype(jnp.int32)  # (C, TL)
    hi = jnp.right_shift(idx, 4)            # (C, TL) in [0, 16)
    lo = jnp.bitwise_and(idx, _R - 1)       # (C, TL) in [0, 16)

    # 16-row iota, built once and reused for every channel / both one-hots.
    iota = jax.lax.broadcasted_iota(jnp.int32, (_R, TL), 0)                     # (R, TL)

    out_refs = (o1_ref, o2_ref, o3_ref)
    for c in range(C):  # C == 3, unrolled
        oh_hi = (iota == hi[c:c + 1, :]).astype(jnp.float32)                    # (R, TL)
        oh_lo = (iota == lo[c:c + 1, :]).astype(jnp.float32)                    # (R, TL)

        # MXU: (3R, R) @ (R, TL) -> m[t*R + l, p] = tf_t[c, 16*hi[p] + l]
        m = jnp.dot(lut_ref[c], oh_hi, preferred_element_type=jnp.float32)      # (3R, TL)

        # Per-lane contraction over lo (VPU mul + sublane reduce), one row per transform.
        for t in range(3):
            m_t = m[t * _R:(t + 1) * _R, :]                                     # (R, TL)
            out_t = jnp.sum(m_t * oh_lo, axis=0, keepdims=True)                 # (1, TL)
            out_refs[t][pl.ds(c, 1), :] = out_t


def _plan_tiling(hw):
    """Pick (tile_lanes, padded_hw): lane-aligned, VMEM-safe, minimal pad waste."""
    hw128 = -(-hw // 128) * 128                      # lane-align
    if hw128 <= _MAX_TILE:
        return hw128, hw128                          # single tile per image
    for tl in (_MAX_TILE, 2048, 1024, 512):          # prefer an exact tiling
        if hw128 % tl == 0:
            return tl, hw128
    tl = 2048
    return tl, -(-hw128 // tl) * tl


@jax.jit
def intensity_transformation(img, tf1, tf2, tf3):
    """img: (N, 3, H, W) in [0, 1]; tf*: (N, 3, 256). Returns [o1, o2, o3], each (N, 3, H, W)."""
    N, C, H, W = img.shape
    K = tf1.shape[-1]
    assert K == _K, f"expected {_K}-entry LUTs, got {K}"
    HW = H * W

    TL, HW_pad = _plan_tiling(HW)
    img_flat = img.reshape(N, C, HW).astype(jnp.float32)
    if HW_pad != HW:
        img_flat = jnp.pad(img_flat, ((0, 0), (0, 0), (0, HW_pad - HW)))

    # Radix-16 LUT layout: luts[n, c, t*R + l, h] == tf_t[n, c, 16*h + l].
    luts = jnp.stack([tf1, tf2, tf3], axis=2).astype(jnp.float32)      # (N, C, 3, 256)
    luts = luts.reshape(N, C, 3, _R, _R).transpose(0, 1, 2, 4, 3)      # (N, C, 3, lo, hi)
    luts = luts.reshape(N, C, 3 * _R, _R)                              # (N, C, 48, 16)

    n_tiles = HW_pad // TL
    io_block = pl.BlockSpec((None, C, TL), lambda n, t: (n, 0, t))

    o1, o2, o3 = pl.pallas_call(
        intensity_kernel,
        out_shape=tuple(jax.ShapeDtypeStruct((N, C, HW_pad), jnp.float32)
                        for _ in range(3)),
        grid_spec=pltpu.PrefetchScalarGridSpec(
            num_scalar_prefetch=0,
            grid=(N, n_tiles),
            in_specs=[
                io_block,
                pl.BlockSpec((None, C, 3 * _R, _R), lambda n, t: (n, 0, 0, 0)),
            ],
            out_specs=(io_block, io_block, io_block),
        ),
        compiler_params=pltpu.CompilerParams(
            dimension_semantics=("parallel", "parallel"),
            vmem_limit_bytes=32 * 1024 * 1024),
    )(img_flat, luts)

    outs = []
    for o in (o1, o2, o3):
        if HW_pad != HW:
            o = o[..., :HW]
        outs.append(o.reshape(N, C, H, W))
    return outs


# --------------------------- pure-JAX reference ------------------------------

def ref_intensity(img, tf1, tf2, tf3):
    N, C, H, W = img.shape
    idx = jnp.round(255.0 * img).astype(jnp.int32).reshape(N, C, H * W)
    outs = []
    for tf in (tf1, tf2, tf3):
        outs.append(jnp.take_along_axis(tf, idx, axis=2).reshape(N, C, H, W))
    return outs


if __name__ == "__main__":
    N, C, H, W, K = 2, 3, 16, 16, 256
    key = jax.random.PRNGKey(0)
    k1, k2, k3, k4 = jax.random.split(key, 4)
    img = jax.random.uniform(k1, (N, C, H, W), jnp.float32)          # values in [0, 1]
    tf1 = jax.random.uniform(k2, (N, C, K), jnp.float32)
    tf2 = jax.random.uniform(k3, (N, C, K), jnp.float32)
    tf3 = jax.random.uniform(k4, (N, C, K), jnp.float32)

    outs = intensity_transformation(img, tf1, tf2, tf3)
    outs = jax.block_until_ready(outs)

    refs = ref_intensity(img, tf1, tf2, tf3)
    for o, r in zip(outs, refs):
        assert o.shape == (N, C, H, W)
        err = float(jnp.max(jnp.abs(o - r)))
        assert jnp.allclose(o, r, atol=1e-5, rtol=1e-5), f"max abs err {err}"

    print("KERNEL_OK")
</pallas_src>

<mosaic_0001>
module attributes {stable_mosaic.version = 11 : i64} {
  func.func @intensity_kernel(%arg0: i32, %arg1: i32, %arg2: memref<1x3x256xf32, #tpu.memory_space<vmem>>, %arg3: memref<1x3x48x16xf32, #tpu.memory_space<vmem>>, %arg4: memref<1x3x256xf32, #tpu.memory_space<vmem>>, %arg5: memref<1x3x256xf32, #tpu.memory_space<vmem>>, %arg6: memref<1x3x256xf32, #tpu.memory_space<vmem>>) attributes {dimension_semantics = [#tpu.dimension_semantics<parallel>, #tpu.dimension_semantics<parallel>], iteration_bounds = array<i64: 2, 1>, scalar_prefetch = 0 : i64, scratch_operands = 0 : i64, tpu.core_type = #tpu.core_type<tc>, window_params = [{transform_indices = @transform_0, window_bounds = array<i64: 1, 3, 256>}, {transform_indices = @transform_1, window_bounds = array<i64: 1, 3, 48, 16>}, {transform_indices = @transform_2, window_bounds = array<i64: 1, 3, 256>}, {transform_indices = @transform_3, window_bounds = array<i64: 1, 3, 256>}, {transform_indices = @transform_4, window_bounds = array<i64: 1, 3, 256>}]} {
    %c0 = arith.constant 0 : index
    %c0_0 = arith.constant 0 : index
    %c0_1 = arith.constant 0 : index
    %0 = vector.load %arg2[%c0, %c0_0, %c0_1] : memref<1x3x256xf32, #tpu.memory_space<vmem>>, vector<1x3x256xf32>
    %1 = vector.shape_cast %0 : vector<1x3x256xf32> to vector<3x256xf32>
    %cst = arith.constant 2.550000e+02 : f32
    %2 = vector.broadcast %cst : f32 to vector<3x256xf32>
    %3 = arith.mulf %2, %1 : vector<3x256xf32>
    %4 = math.roundeven %3 : vector<3x256xf32>
    %cst_2 = arith.constant 0.000000e+00 : f32
    %cst_3 = arith.constant 2.550000e+02 : f32
    %5 = vector.broadcast %cst_2 : f32 to vector<3x256xf32>
    %6 = arith.maximumf %5, %4 : vector<3x256xf32>
    %7 = vector.broadcast %cst_3 : f32 to vector<3x256xf32>
    %8 = arith.minimumf %7, %6 : vector<3x256xf32>
    %9 = arith.fptosi %8 : vector<3x256xf32> to vector<3x256xi32>
    %c4_i32 = arith.constant 4 : i32
    %10 = vector.broadcast %c4_i32 : i32 to vector<3x256xi32>
    %11 = arith.shrsi %9, %10 : vector<3x256xi32>
    %c15_i32 = arith.constant 15 : i32
    %12 = vector.broadcast %c15_i32 : i32 to vector<3x256xi32>
    %13 = arith.andi %9, %12 : vector<3x256xi32>
    %14 = tpu.iota {dimensions = array<i32: 0>} : vector<16x256xi32>
    %15 = vector.extract_strided_slice %11 {offsets = [0, 0], sizes = [1, 256], strides = [1, 1]} : vector<3x256xi32> to vector<1x256xi32>
    %16 = vector.broadcast %15 : vector<1x256xi32> to vector<16x256xi32>
    %17 = arith.cmpi eq, %14, %16 : vector<16x256xi32>
    %18 = arith.extui %17 : vector<16x256xi1> to vector<16x256xi32>
    %19 = arith.sitofp %18 : vector<16x256xi32> to vector<16x256xf32>
    %20 = vector.extract_strided_slice %13 {offsets = [0, 0], sizes = [1, 256], strides = [1, 1]} : vector<3x256xi32> to vector<1x256xi32>
    %21 = vector.broadcast %20 : vector<1x256xi32> to vector<16x256xi32>
    %22 = arith.cmpi eq, %14, %21 : vector<16x256xi32>
    %23 = arith.extui %22 : vector<16x256xi1> to vector<16x256xi32>
    %24 = arith.sitofp %23 : vector<16x256xi32> to vector<16x256xf32>
    %c0_4 = arith.constant 0 : index
    %c0_5 = arith.constant 0 : index
    %c0_6 = arith.constant 0 : index
    %c0_7 = arith.constant 0 : index
    %25 = vector.load %arg3[%c0_4, %c0_5, %c0_6, %c0_7] : memref<1x3x48x16xf32, #tpu.memory_space<vmem>>, vector<1x1x48x16xf32>
    %26 = vector.shape_cast %25 : vector<1x1x48x16xf32> to vector<48x16xf32>
    %cst_8 = arith.constant dense<0.000000e+00> : vector<48x256xf32>
    %27 = tpu.matmul %26, %19, %cst_8 {dimension_numbers = #tpu.dot_dimension_numbers<[1], [0], [0], [1], [0, 0, 1, 1], [], []>} : vector<48x16xf32>, vector<16x256xf32>, vector<48x256xf32> -> vector<48x256xf32>
    %28 = vector.extract_strided_slice %27 {offsets = [0, 0], sizes = [16, 256], strides = [1, 1]} : vector<48x256xf32> to vector<16x256xf32>
    %29 = arith.mulf %28, %24 : vector<16x256xf32>
    %cst_9 = arith.constant dense<0.000000e+00> : vector<256xf32>
    %30 = vector.multi_reduction <add>, %29, %cst_9 [0] : vector<16x256xf32> to vector<256xf32>
    %31 = vector.shape_cast %30 : vector<256xf32> to vector<1x256xf32>
    %c0_10 = arith.constant 0 : index
    %c0_11 = arith.constant 0 : index
    %c0_12 = arith.constant 0 : index
    %32 = vector.load %arg4[%c0_10, %c0_11, %c0_12] : memref<1x3x256xf32, #tpu.memory_space<vmem>>, vector<1x1x256xf32>
    %33 = vector.shape_cast %32 : vector<1x1x256xf32> to vector<1x256xf32>
    %34 = vector.shape_cast %31 : vector<1x256xf32> to vector<1x1x256xf32>
    tpu.vector_store %arg4[%c0_10, %c0_11, %c0_12], %34 {strides = array<i32>} : memref<1x3x256xf32, #tpu.memory_space<vmem>>, vector<1x1x256xf32>,
    %35 = vector.extract_strided_slice %27 {offsets = [16, 0], sizes = [16, 256], strides = [1, 1]} : vector<48x256xf32> to vector<16x256xf32>
    %36 = arith.mulf %35, %24 : vector<16x256xf32>
    %cst_13 = arith.constant dense<0.000000e+00> : vector<256xf32>
    %37 = vector.multi_reduction <add>, %36, %cst_13 [0] : vector<16x256xf32> to vector<256xf32>
    %38 = vector.shape_cast %37 : vector<256xf32> to vector<1x256xf32>
    %c0_14 = arith.constant 0 : index
    %c0_15 = arith.constant 0 : index
    %c0_16 = arith.constant 0 : index
    %39 = vector.load %arg5[%c0_14, %c0_15, %c0_16] : memref<1x3x256xf32, #tpu.memory_space<vmem>>, vector<1x1x256xf32>
    %40 = vector.shape_cast %39 : vector<1x1x256xf32> to vector<1x256xf32>
    %41 = vector.shape_cast %38 : vector<1x256xf32> to vector<1x1x256xf32>
    tpu.vector_store %arg5[%c0_14, %c0_15, %c0_16], %41 {strides = array<i32>} : memref<1x3x256xf32, #tpu.memory_space<vmem>>, vector<1x1x256xf32>,
    %42 = vector.extract_strided_slice %27 {offsets = [32, 0], sizes = [16, 256], strides = [1, 1]} : vector<48x256xf32> to vector<16x256xf32>
    %43 = arith.mulf %42, %24 : vector<16x256xf32>
    %cst_17 = arith.constant dense<0.000000e+00> : vector<256xf32>
    %44 = vector.multi_reduction <add>, %43, %cst_17 [0] : vector<16x256xf32> to vector<256xf32>
    %45 = vector.shape_cast %44 : vector<256xf32> to vector<1x256xf32>
    %c0_18 = arith.constant 0 : index
    %c0_19 = arith.constant 0 : index
    %c0_20 = arith.constant 0 : index
    %46 = vector.load %arg6[%c0_18, %c0_19, %c0_20] : memref<1x3x256xf32, #tpu.memory_space<vmem>>, vector<1x1x256xf32>
    %47 = vector.shape_cast %46 : vector<1x1x256xf32> to vector<1x256xf32>
    %48 = vector.shape_cast %45 : vector<1x256xf32> to vector<1x1x256xf32>
    tpu.vector_store %arg6[%c0_18, %c0_19, %c0_20], %48 {strides = array<i32>} : memref<1x3x256xf32, #tpu.memory_space<vmem>>, vector<1x1x256xf32>,
    %49 = vector.extract_strided_slice %11 {offsets = [1, 0], sizes = [1, 256], strides = [1, 1]} : vector<3x256xi32> to vector<1x256xi32>
    %50 = vector.broadcast %49 : vector<1x256xi32> to vector<16x256xi32>
    %51 = arith.cmpi eq, %14, %50 : vector<16x256xi32>
    %52 = arith.extui %51 : vector<16x256xi1> to vector<16x256xi32>
    %53 = arith.sitofp %52 : vector<16x256xi32> to vector<16x256xf32>
    %54 = vector.extract_strided_slice %13 {offsets = [1, 0], sizes = [1, 256], strides = [1, 1]} : vector<3x256xi32> to vector<1x256xi32>
    %55 = vector.broadcast %54 : vector<1x256xi32> to vector<16x256xi32>
    %56 = arith.cmpi eq, %14, %55 : vector<16x256xi32>
    %57 = arith.extui %56 : vector<16x256xi1> to vector<16x256xi32>
    %58 = arith.sitofp %57 : vector<16x256xi32> to vector<16x256xf32>
    %c0_21 = arith.constant 0 : index
    %c1 = arith.constant 1 : index
    %c0_22 = arith.constant 0 : index
    %c0_23 = arith.constant 0 : index
    %59 = vector.load %arg3[%c0_21, %c1, %c0_22, %c0_23] : memref<1x3x48x16xf32, #tpu.memory_space<vmem>>, vector<1x1x48x16xf32>
    %60 = vector.shape_cast %59 : vector<1x1x48x16xf32> to vector<48x16xf32>
    %cst_24 = arith.constant dense<0.000000e+00> : vector<48x256xf32>
    %61 = tpu.matmul %60, %53, %cst_24 {dimension_numbers = #tpu.dot_dimension_numbers<[1], [0], [0], [1], [0, 0, 1, 1], [], []>} : vector<48x16xf32>, vector<16x256xf32>, vector<48x256xf32> -> vector<48x256xf32>
    %62 = vector.extract_strided_slice %61 {offsets = [0, 0], sizes = [16, 256], strides = [1, 1]} : vector<48x256xf32> to vector<16x256xf32>
    %63 = arith.mulf %62, %58 : vector<16x256xf32>
    %cst_25 = arith.constant dense<0.000000e+00> : vector<256xf32>
    %64 = vector.multi_reduction <add>, %63, %cst_25 [0] : vector<16x256xf32> to vector<256xf32>
    %65 = vector.shape_cast %64 : vector<256xf32> to vector<1x256xf32>
    %c0_26 = arith.constant 0 : index
    %c1_27 = arith.constant 1 : index
    %c0_28 = arith.constant 0 : index
    %66 = vector.load %arg4[%c0_26, %c1_27, %c0_28] : memref<1x3x256xf32, #tpu.memory_space<vmem>>, vector<1x1x256xf32>
    %67 = vector.shape_cast %66 : vector<1x1x256xf32> to vector<1x256xf32>
    %68 = vector.shape_cast %65 : vector<1x256xf32> to vector<1x1x256xf32>
    tpu.vector_store %arg4[%c0_26, %c1_27, %c0_28], %68 {strides = array<i32>} : memref<1x3x256xf32, #tpu.memory_space<vmem>>, vector<1x1x256xf32>,
    %69 = vector.extract_strided_slice %61 {offsets = [16, 0], sizes = [16, 256], strides = [1, 1]} : vector<48x256xf32> to vector<16x256xf32>
    %70 = arith.mulf %69, %58 : vector<16x256xf32>
    %cst_29 = arith.constant dense<0.000000e+00> : vector<256xf32>
    %71 = vector.multi_reduction <add>, %70, %cst_29 [0] : vector<16x256xf32> to vector<256xf32>
    %72 = vector.shape_cast %71 : vector<256xf32> to vector<1x256xf32>
    %c0_30 = arith.constant 0 : index
    %c1_31 = arith.constant 1 : index
    %c0_32 = arith.constant 0 : index
    %73 = vector.load %arg5[%c0_30, %c1_31, %c0_32] : memref<1x3x256xf32, #tpu.memory_space<vmem>>, vector<1x1x256xf32>
    %74 = vector.shape_cast %73 : vector<1x1x256xf32> to vector<1x256xf32>
    %75 = vector.shape_cast %72 : vector<1x256xf32> to vector<1x1x256xf32>
    tpu.vector_store %arg5[%c0_30, %c1_31, %c0_32], %75 {strides = array<i32>} : memref<1x3x256xf32, #tpu.memory_space<vmem>>, vector<1x1x256xf32>,
    %76 = vector.extract_strided_slice %61 {offsets = [32, 0], sizes = [16, 256], strides = [1, 1]} : vector<48x256xf32> to vector<16x256xf32>
    %77 = arith.mulf %76, %58 : vector<16x256xf32>
    %cst_33 = arith.constant dense<0.000000e+00> : vector<256xf32>
    %78 = vector.multi_reduction <add>, %77, %cst_33 [0] : vector<16x256xf32> to vector<256xf32>
    %79 = vector.shape_cast %78 : vector<256xf32> to vector<1x256xf32>
    %c0_34 = arith.constant 0 : index
    %c1_35 = arith.constant 1 : index
    %c0_36 = arith.constant 0 : index
    %80 = vector.load %arg6[%c0_34, %c1_35, %c0_36] : memref<1x3x256xf32, #tpu.memory_space<vmem>>, vector<1x1x256xf32>
    %81 = vector.shape_cast %80 : vector<1x1x256xf32> to vector<1x256xf32>
    %82 = vector.shape_cast %79 : vector<1x256xf32> to vector<1x1x256xf32>
    tpu.vector_store %arg6[%c0_34, %c1_35, %c0_36], %82 {strides = array<i32>} : memref<1x3x256xf32, #tpu.memory_space<vmem>>, vector<1x1x256xf32>,
    %83 = vector.extract_strided_slice %11 {offsets = [2, 0], sizes = [1, 256], strides = [1, 1]} : vector<3x256xi32> to vector<1x256xi32>
    %84 = vector.broadcast %83 : vector<1x256xi32> to vector<16x256xi32>
    %85 = arith.cmpi eq, %14, %84 : vector<16x256xi32>
    %86 = arith.extui %85 : vector<16x256xi1> to vector<16x256xi32>
    %87 = arith.sitofp %86 : vector<16x256xi32> to vector<16x256xf32>
    %88 = vector.extract_strided_slice %13 {offsets = [2, 0], sizes = [1, 256], strides = [1, 1]} : vector<3x256xi32> to vector<1x256xi32>
    %89 = vector.broadcast %88 : vector<1x256xi32> to vector<16x256xi32>
    %90 = arith.cmpi eq, %14, %89 : vector<16x256xi32>
    %91 = arith.extui %90 : vector<16x256xi1> to vector<16x256xi32>
    %92 = arith.sitofp %91 : vector<16x256xi32> to vector<16x256xf32>
    %c0_37 = arith.constant 0 : index
    %c2 = arith.constant 2 : index
    %c0_38 = arith.constant 0 : index
    %c0_39 = arith.constant 0 : index
    %93 = vector.load %arg3[%c0_37, %c2, %c0_38, %c0_39] : memref<1x3x48x16xf32, #tpu.memory_space<vmem>>, vector<1x1x48x16xf32>
    %94 = vector.shape_cast %93 : vector<1x1x48x16xf32> to vector<48x16xf32>
    %cst_40 = arith.constant dense<0.000000e+00> : vector<48x256xf32>
    %95 = tpu.matmul %94, %87, %cst_40 {dimension_numbers = #tpu.dot_dimension_numbers<[1], [0], [0], [1], [0, 0, 1, 1], [], []>} : vector<48x16xf32>, vector<16x256xf32>, vector<48x256xf32> -> vector<48x256xf32>
    %96 = vector.extract_strided_slice %95 {offsets = [0, 0], sizes = [16, 256], strides = [1, 1]} : vector<48x256xf32> to vector<16x256xf32>
    %97 = arith.mulf %96, %92 : vector<16x256xf32>
    %cst_41 = arith.constant dense<0.000000e+00> : vector<256xf32>
    %98 = vector.multi_reduction <add>, %97, %cst_41 [0] : vector<16x256xf32> to vector<256xf32>
    %99 = vector.shape_cast %98 : vector<256xf32> to vector<1x256xf32>
    %c0_42 = arith.constant 0 : index
    %c2_43 = arith.constant 2 : index
    %c0_44 = arith.constant 0 : index
    %100 = vector.load %arg4[%c0_42, %c2_43, %c0_44] : memref<1x3x256xf32, #tpu.memory_space<vmem>>, vector<1x1x256xf32>
    %101 = vector.shape_cast %100 : vector<1x1x256xf32> to vector<1x256xf32>
    %102 = vector.shape_cast %99 : vector<1x256xf32> to vector<1x1x256xf32>
    tpu.vector_store %arg4[%c0_42, %c2_43, %c0_44], %102 {strides = array<i32>} : memref<1x3x256xf32, #tpu.memory_space<vmem>>, vector<1x1x256xf32>,
    %103 = vector.extract_strided_slice %95 {offsets = [16, 0], sizes = [16, 256], strides = [1, 1]} : vector<48x256xf32> to vector<16x256xf32>
    %104 = arith.mulf %103, %92 : vector<16x256xf32>
    %cst_45 = arith.constant dense<0.000000e+00> : vector<256xf32>
    %105 = vector.multi_reduction <add>, %104, %cst_45 [0] : vector<16x256xf32> to vector<256xf32>
    %106 = vector.shape_cast %105 : vector<256xf32> to vector<1x256xf32>
    %c0_46 = arith.constant 0 : index
    %c2_47 = arith.constant 2 : index
    %c0_48 = arith.constant 0 : index
    %107 = vector.load %arg5[%c0_46, %c2_47, %c0_48] : memref<1x3x256xf32, #tpu.memory_space<vmem>>, vector<1x1x256xf32>
    %108 = vector.shape_cast %107 : vector<1x1x256xf32> to vector<1x256xf32>
    %109 = vector.shape_cast %106 : vector<1x256xf32> to vector<1x1x256xf32>
    tpu.vector_store %arg5[%c0_46, %c2_47, %c0_48], %109 {strides = array<i32>} : memref<1x3x256xf32, #tpu.memory_space<vmem>>, vector<1x1x256xf32>,
    %110 = vector.extract_strided_slice %95 {offsets = [32, 0], sizes = [16, 256], strides = [1, 1]} : vector<48x256xf32> to vector<16x256xf32>
    %111 = arith.mulf %110, %92 : vector<16x256xf32>
    %cst_49 = arith.constant dense<0.000000e+00> : vector<256xf32>
    %112 = vector.multi_reduction <add>, %111, %cst_49 [0] : vector<16x256xf32> to vector<256xf32>
    %113 = vector.shape_cast %112 : vector<256xf32> to vector<1x256xf32>
    %c0_50 = arith.constant 0 : index
    %c2_51 = arith.constant 2 : index
    %c0_52 = arith.constant 0 : index
    %114 = vector.load %arg6[%c0_50, %c2_51, %c0_52] : memref<1x3x256xf32, #tpu.memory_space<vmem>>, vector<1x1x256xf32>
    %115 = vector.shape_cast %114 : vector<1x1x256xf32> to vector<1x256xf32>
    %116 = vector.shape_cast %113 : vector<1x256xf32> to vector<1x1x256xf32>
    tpu.vector_store %arg6[%c0_50, %c2_51, %c0_52], %116 {strides = array<i32>} : memref<1x3x256xf32, #tpu.memory_space<vmem>>, vector<1x1x256xf32>,
    return
  }
  func.func @transform_0(%arg0: i32, %arg1: i32) -> (i32, i32, i32) {
    %c0_i32 = arith.constant 0 : i32
    %c0_i32_0 = arith.constant 0 : i32
    return %arg0, %c0_i32, %arg1 : i32, i32, i32
  }
  func.func @transform_1(%arg0: i32, %arg1: i32) -> (i32, i32, i32, i32) {
    %c0_i32 = arith.constant 0 : i32
    %c0_i32_0 = arith.constant 0 : i32
    %c0_i32_1 = arith.constant 0 : i32
    %c0_i32_2 = arith.constant 0 : i32
    return %arg0, %c0_i32, %c0_i32_0, %c0_i32_1 : i32, i32, i32, i32
  }
  func.func @transform_2(%arg0: i32, %arg1: i32) -> (i32, i32, i32) {
    %c0_i32 = arith.constant 0 : i32
    %c0_i32_0 = arith.constant 0 : i32
    return %arg0, %c0_i32, %arg1 : i32, i32, i32
  }
  func.func @transform_3(%arg0: i32, %arg1: i32) -> (i32, i32, i32) {
    %c0_i32 = arith.constant 0 : i32
    %c0_i32_0 = arith.constant 0 : i32
    return %arg0, %c0_i32, %arg1 : i32, i32, i32
  }
  func.func @transform_4(%arg0: i32, %arg1: i32) -> (i32, i32, i32) {
    %c0_i32 = arith.constant 0 : i32
    %c0_i32_0 = arith.constant 0 : i32
    return %arg0, %c0_i32, %arg1 : i32, i32, i32
  }
}

</mosaic_0001>

<llo_original>
// kernel: intensity_transformation.1
$region0: #{intensity_transformation.1}
  #allocation0 [shape = 'u32[]', space=smem, size = 0x4, offset = 0x4, fixed_abs, tag = 'smem constant byte address 0x4 - core index']
  #allocation1 [shape = 'u32[144,128]{1,0:T(1,128)}', space=vmem, size = 0x12000, scoped, tag = 'internal scratch']
  %s0 = inlined_call_operand.vmem [shape: f32[2,3,256], index: 0, kind: input, shape index: {}]
  %s1 = inlined_call_operand.vmem [shape: f32[2,3,48,16], index: 1, kind: input, shape index: {}]
  %s2 = inlined_call_operand.vmem [shape: f32[2,3,256], index: 2, kind: output, shape index: {0}]
  %s3 = inlined_call_operand.vmem [shape: f32[2,3,256], index: 3, kind: output, shape index: {1}]
  %s4 = inlined_call_operand.vmem [shape: f32[2,3,256], index: 4, kind: output, shape index: {2}]
  %5 = xla_tuple %s2, %s3, %s4
  %s6 = sld [smem:[#allocation0]]
  $region57: #{intensity_transformation.1} parent=0
    _
  %s8 = ssub.s32 1, %s6
  %s9 = scalar_select 0, %s8, %s6
  loop: start=0, step=1, limit=4
  $region2: #{intensity_transformation.1} parent=0 // loop_pre_header
    _
  $region3: #{intensity_transformation.1} parent=0 // loop_header
    %s11 = sphi 0, %s15
    %p12 = scmp.ge.s32.totalorder %s11, 4
    %s18 = sphi 0, %s30
    %s19 = sphi 0, %s26
    %s20 = sphi 0, %s18
    %s21 = sphi 0, %s19
    %s22 = sphi 0, %s20
    %s23 = sphi 0, %s21
    %s35 = sphi 0, %s37
    %s38 = sphi 0, %s35
    %s39 = sphi 0, %s38
    %s55 = sphi 0, %s39
    %s61 = sphi 0, %s63
    %s64 = sphi 0, %s61
    %s65 = sphi 0, %s64
    %s81 = sphi 0, %s65
    %s89 = sphi 0, %s91
    %s92 = sphi 0, %s89
    %s93 = sphi 0, %s92
    %s109 = sphi 0, %s93
    %s117 = sphi 0, %s119
    %s120 = sphi 0, %s117
    %s121 = sphi 0, %s120
    %s137 = sphi 0, %s121
    %s145 = sphi 0, %s147
    %s148 = sphi 0, %s145
    %s149 = sphi 0, %s148
    %s165 = sphi 0, %s149
  $region4: #{intensity_transformation.1} parent=0 // loop_header_branch
    %14 = sbr.rel (%p12) target = $region8
  $region5: #{intensity_transformation.1} parent=0 // loop_body
    %s16 = ssub.s32 %s11, 1
    %s17 = ssub.s32 %s11, 2
    %s24 = sadd.s32 1, %s19
    %p25 = scmp.ge.s32.totalorder %s24, 1
    %s26 = scalar_select %p25, 0, %s24
    %s27 = sadd.s32 1, %s18
    %s28 = scalar_select %p25, %s27, %s18
    %p29 = scmp.ge.s32.totalorder %s28, 2
    %s30 = scalar_select %p29, 0, %s28
    %s31 = ssub.s32 %s18, %s30
    %s32 = ssub.s32 %s19, %s26
    %s33 = sor.u32 %s31, %s32
    %p34 = scmp.eq.s32.totalorder %s33, 0
    %s36 = sadd.s32 %s35, 1
    %s37 = scalar_select %p34, %s35, %s36
    %p40 = pneg %p34
    %p41 = scmp.eq.s32.totalorder %s11, 1
    %p42 = por %p40, %p41
    %p43 = scmp.ne.s32.totalorder %s35, %s38
    %p44 = scmp.eq.s32.totalorder %s11, 0
    %p45 = por %p43, %p44
    %p46 = scmp.ne.s32.totalorder %s35, %s38
    %p47 = scmp.eq.s32.totalorder %s16, 1
    %p48 = por %p46, %p47
    %p49 = scmp.ne.s32.totalorder %s38, %s39
    %p50 = scmp.eq.s32.totalorder %s16, 0
    %p51 = por %p49, %p50
    %p52 = scmp.ne.s32.totalorder %s38, %s39
    %p53 = scmp.eq.s32.totalorder %s17, 1
    %p54 = por %p52, %p53
    %p56 = scmp.ne.s32.totalorder %s39, %s55
    %p57 = scmp.eq.s32.totalorder %s17, 0
    %p58 = por %p56, %p57
    %s59 = ssub.s32 %s18, %s30
    %p60 = scmp.eq.s32.totalorder %s59, 0
    %s62 = sadd.s32 %s61, 1
    %s63 = scalar_select %p60, %s61, %s62
    %p66 = pneg %p60
    %p67 = scmp.eq.s32.totalorder %s11, 1
    %p68 = por %p66, %p67
    %p69 = scmp.ne.s32.totalorder %s61, %s64
    %p70 = scmp.eq.s32.totalorder %s11, 0
    %p71 = por %p69, %p70
    %p72 = scmp.ne.s32.totalorder %s61, %s64
    %p73 = scmp.eq.s32.totalorder %s16, 1
    %p74 = por %p72, %p73
    %p75 = scmp.ne.s32.totalorder %s64, %s65
    %p76 = scmp.eq.s32.totalorder %s16, 0
    %p77 = por %p75, %p76
    %p78 = scmp.ne.s32.totalorder %s64, %s65
    %p79 = scmp.eq.s32.totalorder %s17, 1
    %p80 = por %p78, %p79
    %p82 = scmp.ne.s32.totalorder %s65, %s81
    %p83 = scmp.eq.s32.totalorder %s17, 0
    %p84 = por %p82, %p83
    %s85 = ssub.s32 %s18, %s30
    %s86 = ssub.s32 %s19, %s26
    %s87 = sor.u32 %s85, %s86
    %p88 = scmp.eq.s32.totalorder %s87, 0
    %s90 = sadd.s32 %s89, 1
    %s91 = scalar_select %p88, %s89, %s90
    %p94 = pneg %p88
    %p95 = scmp.eq.s32.totalorder %s11, 1
    %p96 = por %p94, %p95
    %p97 = scmp.ne.s32.totalorder %s89, %s92
    %p98 = scmp.eq.s32.totalorder %s11, 0
    %p99 = por %p97, %p98
    %p100 = scmp.ne.s32.totalorder %s89, %s92
    %p101 = scmp.eq.s32.totalorder %s16, 1
    %p102 = por %p100, %p101
    %p103 = scmp.ne.s32.totalorder %s92, %s93
    %p104 = scmp.eq.s32.totalorder %s16, 0
    %p105 = por %p103, %p104
    %p106 = scmp.ne.s32.totalorder %s92, %s93
    %p107 = scmp.eq.s32.totalorder %s17, 1
    %p108 = por %p106, %p107
    %p110 = scmp.ne.s32.totalorder %s93, %s109
    %p111 = scmp.eq.s32.totalorder %s17, 0
    %p112 = por %p110, %p111
    %s113 = ssub.s32 %s18, %s30
    %s114 = ssub.s32 %s19, %s26
    %s115 = sor.u32 %s113, %s114
    %p116 = scmp.eq.s32.totalorder %s115, 0
    %s118 = sadd.s32 %s117, 1
    %s119 = scalar_select %p116, %s117, %s118
    %p122 = pneg %p116
    %p123 = scmp.eq.s32.totalorder %s11, 1
    %p124 = por %p122, %p123
    %p125 = scmp.ne.s32.totalorder %s117, %s120
    %p126 = scmp.eq.s32.totalorder %s11, 0
    %p127 = por %p125, %p126
    %p128 = scmp.ne.s32.totalorder %s117, %s120
    %p129 = scmp.eq.s32.totalorder %s16, 1
    %p130 = por %p128, %p129
    %p131 = scmp.ne.s32.totalorder %s120, %s121
    %p132 = scmp.eq.s32.totalorder %s16, 0
    %p133 = por %p131, %p132
    %p134 = scmp.ne.s32.totalorder %s120, %s121
    %p135 = scmp.eq.s32.totalorder %s17, 1
    %p136 = por %p134, %p135
    %p138 = scmp.ne.s32.totalorder %s121, %s137
    %p139 = scmp.eq.s32.totalorder %s17, 0
    %p140 = por %p138, %p139
    %s141 = ssub.s32 %s18, %s30
    %s142 = ssub.s32 %s19, %s26
    %s143 = sor.u32 %s141, %s142
    %p144 = scmp.eq.s32.totalorder %s143, 0
    %s146 = sadd.s32 %s145, 1
    %s147 = scalar_select %p144, %s145, %s146
    %p150 = pneg %p144
    %p151 = scmp.eq.s32.totalorder %s11, 1
    %p152 = por %p150, %p151
    %p153 = scmp.ne.s32.totalorder %s145, %s148
    %p154 = scmp.eq.s32.totalorder %s11, 0
    %p155 = por %p153, %p154
    %p156 = scmp.ne.s32.totalorder %s145, %s148
    %p157 = scmp.eq.s32.totalorder %s16, 1
    %p158 = por %p156, %p157
    %p159 = scmp.ne.s32.totalorder %s148, %s149
    %p160 = scmp.eq.s32.totalorder %s16, 0
    %p161 = por %p159, %p160
    %p162 = scmp.ne.s32.totalorder %s148, %s149
    %p163 = scmp.eq.s32.totalorder %s17, 1
    %p164 = por %p162, %p163
    %p166 = scmp.ne.s32.totalorder %s149, %s165
    %p167 = scmp.eq.s32.totalorder %s17, 0
    %p168 = por %p166, %p167
    %p169 = scmp.le.s32.totalorder 1, %s11
    %p170 = scmp.lt.s32.totalorder %s11, 3
    %p171 = pnand %p169, %p170
    %p172 = pneg %p171
    // Predicated region
    $region9: #{intensity_transformation.1} parent=5 // pred_check
      _
    $region10: #{intensity_transformation.1} parent=5 // pred_check_branch
      %174 = sbr.rel (%p171) target = $region12
    $region11: #{intensity_transformation.1} parent=5 // pred_region
      %s175 = ssub.s32 %s11, 1
    $region12: #{intensity_transformation.1} parent=5 // pred_fallthru
      _
    %p176 = scmp.lt.s32.totalorder %s11, 2
    // Predicated region
    $region13: #{intensity_transformation.1} parent=5 // pred_check
      %p177 = pneg %p176
    $region14: #{intensity_transformation.1} parent=5 // pred_check_branch
      %179 = sbr.rel (%p177) target = $region16
    $region15: #{intensity_transformation.1} parent=5 // pred_region
      // Predicated region
      $region17: #{intensity_transformation.1} parent=15 // pred_check
        %p180 = pneg %p45
      $region18: #{intensity_transformation.1} parent=15 // pred_check_branch
        %182 = sbr.rel (%p180) target = $region20
      $region19: #{intensity_transformation.1} parent=15 // pred_region
        %s183 = smul.u32 2, %s19
        %p184 = scmp.lt.s32.totalorder %s18, 1
        %s185 = scalar_select %p184, %s18, 1
        %p186 = scmp.lt.s32.totalorder %s183, 1
        %s187 = scalar_select %p186, %s183, 1
        %s188 = smul.addr %s185, 2
        %s189 = sadd.s32 %s187, %s188
        %s190 = smul.addr %s189, 4
        %s191 = scalar_lea.vmem %s0, %s190
        %s192 = smul.u32 2, %s19
      $region20: #{intensity_transformation.1} parent=15 // pred_fallthru
        _
      // Predicated region
      $region21: #{intensity_transformation.1} parent=15 // pred_check
        %p193 = pneg %p71
      $region22: #{intensity_transformation.1} parent=15 // pred_check_branch
        %195 = sbr.rel (%p193) target = $region24
      $region23: #{intensity_transformation.1} parent=15 // pred_region
        %p196 = scmp.lt.s32.totalorder %s18, 1
        %s197 = scalar_select %p196, %s18, 1
        %s198 = smul.addr %s197, 18
        %s199 = smul.addr %s198, 8
        %s200 = scalar_lea.vmem %s1, %s199
      $region24: #{intensity_transformation.1} parent=15 // pred_fallthru
        _
    $region16: #{intensity_transformation.1} parent=5 // pred_fallthru
      _
    %p201 = scmp.le.s32.totalorder 1, %s11
    %p202 = scmp.lt.s32.totalorder %s11, 3
    %p203 = pnand %p201, %p202
    %p204 = pneg %p203
    // Predicated region
    $region25: #{intensity_transformation.1} parent=5 // pred_check
      _
    $region26: #{intensity_transformation.1} parent=5 // pred_check_branch
      %206 = sbr.rel (%p203) target = $region28
    $region27: #{intensity_transformation.1} parent=5 // pred_region
      %s207 = ssub.s32 %s11, 1
      %s208 = smul.u32 2, %s21
      %p209 = scmp.lt.s32.totalorder %s20, 1
      %s210 = scalar_select %p209, %s20, 1
      %p211 = scmp.lt.s32.totalorder %s208, 1
      %s212 = scalar_select %p211, %s208, 1
      %s213 = smul.addr %s210, 2
      %s214 = sadd.s32 %s212, %s213
      %s215 = smul.addr %s214, 4
      %s216 = scalar_lea.vmem %s0, %s215
      %p217 = pneg %p51
      %p218 = pneg %p48
      %p219 = scmp.lt.s32.totalorder %s20, 1
      %s220 = scalar_select %p219, %s20, 1
      %s221 = smul.addr %s220, 18
      %s222 = smul.addr %s221, 8
      %s223 = scalar_lea.vmem %s1, %s222
      %p224 = pneg %p77
      %p225 = pneg %p74
      %p226 = pneg %p105
      %p227 = pneg %p102
      %s228 = smul.u32 2, %s21
      %p229 = scmp.lt.s32.totalorder %s20, 1
      %s230 = scalar_select %p229, %s20, 1
      %p231 = scmp.lt.s32.totalorder %s228, 1
      %s232 = scalar_select %p231, %s228, 1
      %s233 = smul.addr %s230, 2
      %s234 = sadd.s32 %s232, %s233
      %s235 = smul.addr %s234, 4
      %s236 = scalar_lea.vmem %s2, %s235
      %p237 = pneg %p133
      %p238 = pneg %p130
      %s239 = smul.u32 2, %s21
      %p240 = scmp.lt.s32.totalorder %s20, 1
      %s241 = scalar_select %p240, %s20, 1
      %p242 = scmp.lt.s32.totalorder %s239, 1
      %s243 = scalar_select %p242, %s239, 1
      %s244 = smul.addr %s241, 2
      %s245 = sadd.s32 %s243, %s244
      %s246 = smul.addr %s245, 4
      %s247 = scalar_lea.vmem %s3, %s246
      %p248 = pneg %p161
      %p249 = pneg %p158
      %s250 = smul.u32 2, %s21
      %p251 = scmp.lt.s32.totalorder %s20, 1
      %s252 = scalar_select %p251, %s20, 1
      %p253 = scmp.lt.s32.totalorder %s250, 1
      %s254 = scalar_select %p253, %s250, 1
      %s255 = smul.addr %s252, 2
      %s256 = sadd.s32 %s254, %s255
      %s257 = smul.addr %s256, 4
      %s258 = scalar_lea.vmem %s4, %s257
      %s259 = smul.u32 2, %s21
      %p260 = scmp.lt.s32.totalorder %s20, 1
      %s261 = scalar_select %p260, %s20, 1
      %p262 = scmp.lt.s32.totalorder %s259, 1
      %s263 = scalar_select %p262, %s259, 1
      %s264 = smul.addr %s261, 2
      %s265 = sadd.s32 %s263, %s264
      %s266 = smul.addr %s265, 4
      %s267 = scalar_lea.vmem %s0, %s266
      %s268 = smul.u32 2, %s21
      %p269 = scmp.lt.s32.totalorder %s20, 1
      %s270 = scalar_select %p269, %s20, 1
      %s271 = smul.addr %s270, 18
      %s272 = smul.addr %s271, 8
      %s273 = scalar_lea.vmem %s1, %s272
      %s274 = smul.u32 2, %s21
      %p275 = scmp.lt.s32.totalorder %s20, 1
      %s276 = scalar_select %p275, %s20, 1
      %p277 = scmp.lt.s32.totalorder %s274, 1
      %s278 = scalar_select %p277, %s274, 1
      %s279 = smul.addr %s276, 2
      %s280 = sadd.s32 %s278, %s279
      %s281 = smul.addr %s280, 4
      %s282 = scalar_lea.vmem %s2, %s281
      %s283 = smul.u32 2, %s21
      %s284 = smul.u32 2, %s21
      %p285 = scmp.lt.s32.totalorder %s20, 1
      %s286 = scalar_select %p285, %s20, 1
      %p287 = scmp.lt.s32.totalorder %s284, 1
      %s288 = scalar_select %p287, %s284, 1
      %s289 = smul.addr %s286, 2
      %s290 = sadd.s32 %s288, %s289
      %s291 = smul.addr %s290, 4
      %s292 = scalar_lea.vmem %s3, %s291
      %s293 = smul.u32 2, %s21
      %s294 = smul.u32 2, %s21
      %p295 = scmp.lt.s32.totalorder %s20, 1
      %s296 = scalar_select %p295, %s20, 1
      %p297 = scmp.lt.s32.totalorder %s294, 1
      %s298 = scalar_select %p297, %s294, 1
      %s299 = smul.addr %s296, 2
      %s300 = sadd.s32 %s298, %s299
      %s301 = smul.addr %s300, 4
      %s302 = scalar_lea.vmem %s4, %s301
      %s303 = smul.u32 2, %s21
      %v304 = vld [vmem:[%s267] sm:$0x77]
      %v305 = vmul.f32 %v304, 255.0
      %v306 = vround.ne.pseudo %v305
      %v307 = vmax.f32 %v306, 0.0
      %v308 = vmin.f32 %v307, 255.0
      %v309 = vcvt.f32.s32.to.zero.pseudo %v308
      %v310 = vshra.s32 %v309, 4
      %v311 = vand.u32 %v309, 15
      %v312 = vlaneseq
      %v313 = vshrl.u32 %v312, 7
      %v314 = vadd.s32 %v313, 8
      %v315 = vlaneseq
      %v316 = vshrl.u32 %v315, 7
      %v317 = vsub.s32 0, %v316
      %v318 = vrot.slane %v310, %v317
      %v319 = vlaneseq
      %v320 = vshrl.u32 %v319, 7
      %v321 = vsub.s32 4, %v320
      %v322 = vrot.slane %v310, %v321
      %v323 = vlaneseq
      %v324 = vshrl.u32 %v323, 7
      %v325 = vsub.s32 0, %v324
      %v326 = vrot.slane %v318, %v325
      %v327 = vlaneseq
      %v328 = vshrl.u32 %v327, 7
      %v329 = vsub.s32 0, %v328
      %v330 = vrot.slane %v322, %v329
      %vm331 = vcmp.eq.s32.totalorder %v313, %v326
      %vm332 = vcmp.eq.s32.totalorder %v313, %v330
      %vm333 = vcmp.eq.s32.totalorder %v314, %v326
      %vm334 = vcmp.eq.s32.totalorder %v314, %v330
      %v335 = vsel %vm331, 1, 0
      %v336 = vsel %vm332, 1, 0
      %v337 = vsel %vm333, 1, 0
      %v338 = vsel %vm334, 1, 0
      %v339 = vcvt.s32.f32 %v335
      %v340 = vcvt.s32.f32 %v336
      %v341 = vcvt.s32.f32 %v337
      %v342 = vcvt.s32.f32 %v338
      %v343 = vlaneseq
      %v344 = vshrl.u32 %v343, 7
      %v345 = vsub.s32 0, %v344
      %v346 = vrot.slane %v311, %v345
      %v347 = vlaneseq
      %v348 = vshrl.u32 %v347, 7
      %v349 = vsub.s32 4, %v348
      %v350 = vrot.slane %v311, %v349
      %v351 = vlaneseq
      %v352 = vshrl.u32 %v351, 7
      %v353 = vsub.s32 0, %v352
      %v354 = vrot.slane %v346, %v353
      %v355 = vlaneseq
      %v356 = vshrl.u32 %v355, 7
      %v357 = vsub.s32 0, %v356
      %v358 = vrot.slane %v350, %v357
      %vm359 = vcmp.eq.s32.totalorder %v313, %v354
      %vm360 = vcmp.eq.s32.totalorder %v313, %v358
      %vm361 = vcmp.eq.s32.totalorder %v314, %v354
      %vm362 = vcmp.eq.s32.totalorder %v314, %v358
      %v363 = vsel %vm359, 1, 0
      %v364 = vsel %vm360, 1, 0
      %v365 = vsel %vm361, 1, 0
      %v366 = vsel %vm362, 1, 0
      %v367 = vcvt.s32.f32 %v363
      %v368 = vcvt.s32.f32 %v364
      %v369 = vcvt.s32.f32 %v365
      %v370 = vcvt.s32.f32 %v366
      %v371 = vld [vmem:[%s273] sm:$0xff]
      %v372 = vld [vmem:[%s273 + $0x8] sm:$0xff]
      %v373 = vld [vmem:[%s273 + $0x10] sm:$0xff]
      %v374 = vld [vmem:[%s273 + $0x18] sm:$0xff]
      %v375 = vld [vmem:[%s273 + $0x20] sm:$0xff]
      %v376 = vld [vmem:[%s273 + $0x28] sm:$0xff]
      %vm377 = vcmask 130048
      %v379 = vsel %vm377, %v371, 0
      %v382 = vsel %vm377, %v372, 0
      %v385 = vsel %vm377, %v373, 0
      %v388 = vsel %vm377, %v374, 0
      %v391 = vsel %vm377, %v375, 0
      %v394 = vsel %vm377, %v376, 0
      %396 = vmatprep.subr.mxu0 0.0
      %397 = vmatpush1.msra.mxu0 0.0
      %398 = vmatprep.subr.mxu0 0.0
      %399 = vmatpush1.msra.mxu0 0.0
      %400 = vmatprep.subr.mxu0 0.0
      %401 = vmatpush1.msra.mxu0 0.0
      %402 = vmatprep.subr.mxu0 0.0
      %403 = vmatpush1.msra.mxu0 0.0
      %404 = vmatprep.subr.mxu0 0.0
      %405 = vmatpush1.msra.mxu0 0.0
      %406 = vmatprep.subr.mxu0 0.0
      %407 = vmatpush1.msra.mxu0 0.0
      %408 = vmatprep.subr.mxu0 0.0
      %409 = vmatpush1.msra.mxu0 0.0
      %410 = vmatprep.subr.mxu0 0.0
      %411 = vmatpush1.msra.mxu0 0.0
      %412 = vmatprep.subr.mxu0 0.0
      %413 = vmatpush1.msra.mxu0 0.0
      %414 = vmatprep.subr.mxu0 0.0
      %415 = vmatpush1.msra.mxu0 0.0
      %416 = vmatprep.subr.mxu0 0.0
      %417 = vmatpush1.msra.mxu0 0.0
      %418 = vmatprep.subr.mxu0 0.0
      %419 = vmatpush1.msra.mxu0 0.0
      %420 = vmatprep.subr.mxu0 0.0
      %421 = vmatpush1.msra.mxu0 0.0
      %422 = vmatprep.subr.mxu0 0.0
      %423 = vmatpush1.msra.mxu0 0.0
      %424 = vmatprep.subr.mxu0 %v342
      %425 = vmatpush1.msra.mxu0 %v341
      %426 = vmatprep.subr.mxu0 %v340
      %427 = vmatpush1.msra.mxu0 %v339
      %428 = vmatprep.subr.mxu0 0.0
      %429 = vmatpush2.msra.mxu0 0.0
      %430 = vmatprep.subr.mxu0 0.0
      %431 = vmatpush2.msra.mxu0 0.0
      %432 = vmatprep.subr.mxu0 0.0
      %433 = vmatpush2.msra.mxu0 0.0
      %434 = vmatprep.subr.mxu0 0.0
      %435 = vmatpush2.msra.mxu0 0.0
      %436 = vmatprep.subr.mxu0 0.0
      %437 = vmatpush2.msra.mxu0 0.0
      %438 = vmatprep.subr.mxu0 0.0
      %439 = vmatpush2.msra.mxu0 0.0
      %440 = vmatprep.subr.mxu0 0.0
      %441 = vmatpush2.msra.mxu0 0.0
      %442 = vmatprep.subr.mxu0 0.0
      %443 = vmatpush2.msra.mxu0 0.0
      %444 = vmatprep.subr.mxu0 0.0
      %445 = vmatpush2.msra.mxu0 0.0
      %446 = vmatprep.subr.mxu0 0.0
      %447 = vmatpush2.msra.mxu0 0.0
      %448 = vmatprep.subr.mxu0 0.0
      %449 = vmatpush2.msra.mxu0 0.0
      %450 = vmatprep.subr.mxu0 0.0
      %451 = vmatpush2.msra.mxu0 0.0
      %452 = vmatprep.subr.mxu0 0.0
      %453 = vmatpush2.msra.mxu0 0.0
      %454 = vmatprep.subr.mxu0 0.0
      %455 = vmatpush2.msra.mxu0 0.0
      %456 = vmatprep.subr.mxu0 0.0
      %457 = vmatpush2.msra.mxu0 0.0
      %458 = vmatprep.subr.mxu0 0.0
      %459 = vmatpush2.msra.mxu0 0.0
      %460 = vmatprep.mubr.f32.mxu0 0.0
      %461 = vmatmul.mubr.f32.gmra.mxu0 %v379
      %v462 = vpop.f32.mrf.mxu0
      %v463 = vadd.f32 0.0, %v462
      %v464 = vpop.f32.mrf.mxu0
      %v465 = vadd.f32 0.0, %v464
      %466 = vmatprep.mubr.f32.mxu0 0.0
      %467 = vmatmul.mubr.f32.gmra.mxu0 %v382
      %v468 = vpop.f32.mrf.mxu0
      %v469 = vadd.f32 0.0, %v468
      %v470 = vpop.f32.mrf.mxu0
      %v471 = vadd.f32 0.0, %v470
      %472 = vmatprep.mubr.f32.mxu0 0.0
      %473 = vmatmul.mubr.f32.gmra.mxu0 %v385
      %v474 = vpop.f32.mrf.mxu0
      %v475 = vadd.f32 0.0, %v474
      %v476 = vpop.f32.mrf.mxu0
      %v477 = vadd.f32 0.0, %v476
      %478 = vmatprep.mubr.f32.mxu0 0.0
      %479 = vmatmul.mubr.f32.gmra.mxu0 %v388
      %v480 = vpop.f32.mrf.mxu0
      %v481 = vadd.f32 0.0, %v480
      %v482 = vpop.f32.mrf.mxu0
      %v483 = vadd.f32 0.0, %v482
      %484 = vmatprep.mubr.f32.mxu0 0.0
      %485 = vmatmul.mubr.f32.gmra.mxu0 %v391
      %v486 = vpop.f32.mrf.mxu0
      %v487 = vadd.f32 0.0, %v486
      %v488 = vpop.f32.mrf.mxu0
      %v489 = vadd.f32 0.0, %v488
      %490 = vmatprep.mubr.f32.mxu0 0.0
      %491 = vmatmul.mubr.f32.gmra.mxu0 %v394
      %v492 = vpop.f32.mrf.mxu0
      %v493 = vadd.f32 0.0, %v492
      %v494 = vpop.f32.mrf.mxu0
      %v495 = vadd.f32 0.0, %v494
      %496 = vdwg.mxu0
      %v497 = vmul.f32 %v463, %v367
      %v498 = vmul.f32 %v465, %v368
      %v499 = vmul.f32 %v469, %v369
      %v500 = vmul.f32 %v471, %v370
      %v501 = vadd.f32 %v497, %v499
      %v502 = vrot.slane %v501, 4
      %v503 = vadd.f32 %v501, %v502
      %v504 = vrot.slane %v503, 2
      %v505 = vadd.f32 %v503, %v504
      %v506 = vrot.slane %v505, 1
      %v507 = vadd.f32 %v505, %v506
      %v508 = vadd.f32 %v498, %v500
      %v509 = vrot.slane %v508, 4
      %v510 = vadd.f32 %v508, %v509
      %v511 = vrot.slane %v510, 2
      %v512 = vadd.f32 %v510, %v511
      %v513 = vrot.slane %v512, 1
      %v514 = vadd.f32 %v512, %v513
      %v517 = vcombine.low %v507, %v514
      %v519 = vunpack.c.l.s4 1966171168
      %v520 = vunpack.c.0.s8 %v519
      %v521 = vlaneseq
      %v522 = vshrl.u32 %v521, 7
      %v523 = vsub.s32 %v520, %v522
      %v524 = vrot.slane %v517, %v523
      %v526 = vunpack.c.l.s4 1966171168
      %v527 = vunpack.c.0.s8 %v526
      %v528 = vlaneseq
      %v529 = vshrl.u32 %v528, 7
      %v530 = vsub.s32 %v527, %v529
      %v531 = vrot.slane %v524, %v530
      %v533 = vlaneseq
      %vm534 = vcmp.ge.s32.totalorder %v533, 0
      %vm535 = vcmp.lt.s32.totalorder %v533, 256
      %vm536 = vmand %vm534, %vm535
      %537 = vst.msk [vmem:[%s282] ss:$4 sm:$0x3] %vm536, %v531
      %v538 = vmul.f32 %v475, %v367
      %v539 = vmul.f32 %v477, %v368
      %v540 = vmul.f32 %v481, %v369
      %v541 = vmul.f32 %v483, %v370
      %v542 = vadd.f32 %v538, %v540
      %v543 = vrot.slane %v542, 4
      %v544 = vadd.f32 %v542, %v543
      %v545 = vrot.slane %v544, 2
      %v546 = vadd.f32 %v544, %v545
      %v547 = vrot.slane %v546, 1
      %v548 = vadd.f32 %v546, %v547
      %v549 = vadd.f32 %v539, %v541
      %v550 = vrot.slane %v549, 4
      %v551 = vadd.f32 %v549, %v550
      %v552 = vrot.slane %v551, 2
      %v553 = vadd.f32 %v551, %v552
      %v554 = vrot.slane %v553, 1
      %v555 = vadd.f32 %v553, %v554
      %v558 = vcombine.low %v548, %v555
      %v560 = vunpack.c.l.s4 1966171168
      %v561 = vunpack.c.0.s8 %v560
      %v562 = vlaneseq
      %v563 = vshrl.u32 %v562, 7
      %v564 = vsub.s32 %v561, %v563
      %v565 = vrot.slane %v558, %v564
      %v567 = vunpack.c.l.s4 1966171168
      %v568 = vunpack.c.0.s8 %v567
      %v569 = vlaneseq
      %v570 = vshrl.u32 %v569, 7
      %v571 = vsub.s32 %v568, %v570
      %v572 = vrot.slane %v565, %v571
      %574 = vst.msk [vmem:[%s292] ss:$4 sm:$0x3] %vm536, %v572
      %v575 = vmul.f32 %v487, %v367
      %v576 = vmul.f32 %v489, %v368
      %v577 = vmul.f32 %v493, %v369
      %v578 = vmul.f32 %v495, %v370
      %v579 = vadd.f32 %v575, %v577
      %v580 = vrot.slane %v579, 4
      %v581 = vadd.f32 %v579, %v580
      %v582 = vrot.slane %v581, 2
      %v583 = vadd.f32 %v581, %v582
      %v584 = vrot.slane %v583, 1
      %v585 = vadd.f32 %v583, %v584
      %v586 = vadd.f32 %v576, %v578
      %v587 = vrot.slane %v586, 4
      %v588 = vadd.f32 %v586, %v587
      %v589 = vrot.slane %v588, 2
      %v590 = vadd.f32 %v588, %v589
      %v591 = vrot.slane %v590, 1
      %v592 = vadd.f32 %v590, %v591
      %v595 = vcombine.low %v585, %v592
      %v597 = vunpack.c.l.s4 1966171168
      %v598 = vunpack.c.0.s8 %v597
      %v599 = vlaneseq
      %v600 = vshrl.u32 %v599, 7
      %v601 = vsub.s32 %v598, %v600
      %v602 = vrot.slane %v595, %v601
      %v604 = vunpack.c.l.s4 1966171168
      %v605 = vunpack.c.0.s8 %v604
      %v606 = vlaneseq
      %v607 = vshrl.u32 %v606, 7
      %v608 = vsub.s32 %v605, %v607
      %v609 = vrot.slane %v602, %v608
      %611 = vst.msk [vmem:[%s302] ss:$4 sm:$0x3] %vm536, %v609
      %v612 = vlaneseq
      %v613 = vshrl.u32 %v612, 7
      %v614 = vsub.s32 1, %v613
      %v615 = vrot.slane %v310, %v614
      %v616 = vlaneseq
      %v617 = vshrl.u32 %v616, 7
      %v618 = vsub.s32 5, %v617
      %v619 = vrot.slane %v310, %v618
      %v620 = vlaneseq
      %v621 = vshrl.u32 %v620, 7
      %v622 = vsub.s32 1, %v621
      %v623 = vrot.slane %v615, %v622
      %v624 = vlaneseq
      %v625 = vshrl.u32 %v624, 7
      %v626 = vsub.s32 1, %v625
      %v627 = vrot.slane %v619, %v626
      %vm628 = vcmp.eq.s32.totalorder %v313, %v623
      %vm629 = vcmp.eq.s32.totalorder %v313, %v627
      %vm630 = vcmp.eq.s32.totalorder %v314, %v623
      %vm631 = vcmp.eq.s32.totalorder %v314, %v627
      %v632 = vsel %vm628, 1, 0
      %v633 = vsel %vm629, 1, 0
      %v634 = vsel %vm630, 1, 0
      %v635 = vsel %vm631, 1, 0
      %v636 = vcvt.s32.f32 %v632
      %v637 = vcvt.s32.f32 %v633
      %v638 = vcvt.s32.f32 %v634
      %v639 = vcvt.s32.f32 %v635
      %v640 = vlaneseq
      %v641 = vshrl.u32 %v640, 7
      %v642 = vsub.s32 1, %v641
      %v643 = vrot.slane %v311, %v642
      %v644 = vlaneseq
      %v645 = vshrl.u32 %v644, 7
      %v646 = vsub.s32 5, %v645
      %v647 = vrot.slane %v311, %v646
      %v648 = vlaneseq
      %v649 = vshrl.u32 %v648, 7
      %v650 = vsub.s32 1, %v649
      %v651 = vrot.slane %v643, %v650
      %v652 = vlaneseq
      %v653 = vshrl.u32 %v652, 7
      %v654 = vsub.s32 1, %v653
      %v655 = vrot.slane %v647, %v654
      %vm656 = vcmp.eq.s32.totalorder %v313, %v651
      %vm657 = vcmp.eq.s32.totalorder %v313, %v655
      %vm658 = vcmp.eq.s32.totalorder %v314, %v651
      %vm659 = vcmp.eq.s32.totalorder %v314, %v655
      %v660 = vsel %vm656, 1, 0
      %v661 = vsel %vm657, 1, 0
      %v662 = vsel %vm658, 1, 0
      %v663 = vsel %vm659, 1, 0
      %v664 = vcvt.s32.f32 %v660
      %v665 = vcvt.s32.f32 %v661
      %v666 = vcvt.s32.f32 %v662
      %v667 = vcvt.s32.f32 %v663
      %s668 = scalar_lea.vmem %s273, 48
      %v669 = vld [vmem:[%s668] sm:$0xff]
      %v670 = vld [vmem:[%s668 + $0x8] sm:$0xff]
      %v671 = vld [vmem:[%s668 + $0x10] sm:$0xff]
      %v672 = vld [vmem:[%s668 + $0x18] sm:$0xff]
      %v673 = vld [vmem:[%s668 + $0x20] sm:$0xff]
      %v674 = vld [vmem:[%s668 + $0x28] sm:$0xff]
      %v676 = vsel %vm377, %v669, 0
      %v679 = vsel %vm377, %v670, 0
      %v682 = vsel %vm377, %v671, 0
      %v685 = vsel %vm377, %v672, 0
      %v688 = vsel %vm377, %v673, 0
      %v691 = vsel %vm377, %v674, 0
      %693 = vmatprep.subr.mxu0 0.0
      %694 = vmatpush1.msra.mxu0 0.0
      %695 = vmatprep.subr.mxu0 0.0
      %696 = vmatpush1.msra.mxu0 0.0
      %697 = vmatprep.subr.mxu0 0.0
      %698 = vmatpush1.msra.mxu0 0.0
      %699 = vmatprep.subr.mxu0 0.0
      %700 = vmatpush1.msra.mxu0 0.0
      %701 = vmatprep.subr.mxu0 0.0
      %702 = vmatpush1.msra.mxu0 0.0
      %703 = vmatprep.subr.mxu0 0.0
      %704 = vmatpush1.msra.mxu0 0.0
      %705 = vmatprep.subr.mxu0 0.0
      %706 = vmatpush1.msra.mxu0 0.0
      %707 = vmatprep.subr.mxu0 0.0
      %708 = vmatpush1.msra.mxu0 0.0
      %709 = vmatprep.subr.mxu0 0.0
      %710 = vmatpush1.msra.mxu0 0.0
      %711 = vmatprep.subr.mxu0 0.0
      %712 = vmatpush1.msra.mxu0 0.0
      %713 = vmatprep.subr.mxu0 0.0
      %714 = vmatpush1.msra.mxu0 0.0
      %715 = vmatprep.subr.mxu0 0.0
      %716 = vmatpush1.msra.mxu0 0.0
      %717 = vmatprep.subr.mxu0 0.0
      %718 = vmatpush1.msra.mxu0 0.0
      %719 = vmatprep.subr.mxu0 0.0
      %720 = vmatpush1.msra.mxu0 0.0
      %721 = vmatprep.subr.mxu0 %v639
      %722 = vmatpush1.msra.mxu0 %v638
      %723 = vmatprep.subr.mxu0 %v637
      %724 = vmatpush1.msra.mxu0 %v636
      %725 = vmatprep.subr.mxu0 0.0
      %726 = vmatpush2.msra.mxu0 0.0
      %727 = vmatprep.subr.mxu0 0.0
      %728 = vmatpush2.msra.mxu0 0.0
      %729 = vmatprep.subr.mxu0 0.0
      %730 = vmatpush2.msra.mxu0 0.0
      %731 = vmatprep.subr.mxu0 0.0
      %732 = vmatpush2.msra.mxu0 0.0
      %733 = vmatprep.subr.mxu0 0.0
      %734 = vmatpush2.msra.mxu0 0.0
      %735 = vmatprep.subr.mxu0 0.0
      %736 = vmatpush2.msra.mxu0 0.0
      %737 = vmatprep.subr.mxu0 0.0
      %738 = vmatpush2.msra.mxu0 0.0
      %739 = vmatprep.subr.mxu0 0.0
      %740 = vmatpush2.msra.mxu0 0.0
      %741 = vmatprep.subr.mxu0 0.0
      %742 = vmatpush2.msra.mxu0 0.0
      %743 = vmatprep.subr.mxu0 0.0
      %744 = vmatpush2.msra.mxu0 0.0
      %745 = vmatprep.subr.mxu0 0.0
      %746 = vmatpush2.msra.mxu0 0.0
      %747 = vmatprep.subr.mxu0 0.0
      %748 = vmatpush2.msra.mxu0 0.0
      %749 = vmatprep.subr.mxu0 0.0
      %750 = vmatpush2.msra.mxu0 0.0
      %751 = vmatprep.subr.mxu0 0.0
      %752 = vmatpush2.msra.mxu0 0.0
      %753 = vmatprep.subr.mxu0 0.0
      %754 = vmatpush2.msra.mxu0 0.0
      %755 = vmatprep.subr.mxu0 0.0
      %756 = vmatpush2.msra.mxu0 0.0
      %757 = vmatprep.mubr.f32.mxu0 0.0
      %758 = vmatmul.mubr.f32.gmra.mxu0 %v676
      %v759 = vpop.f32.mrf.mxu0
      %v760 = vadd.f32 0.0, %v759
      %v761 = vpop.f32.mrf.mxu0
      %v762 = vadd.f32 0.0, %v761
      %763 = vmatprep.mubr.f32.mxu0 0.0
      %764 = vmatmul.mubr.f32.gmra.mxu0 %v679
      %v765 = vpop.f32.mrf.mxu0
      %v766 = vadd.f32 0.0, %v765
      %v767 = vpop.f32.mrf.mxu0
      %v768 = vadd.f32 0.0, %v767
      %769 = vmatprep.mubr.f32.mxu0 0.0
      %770 = vmatmul.mubr.f32.gmra.mxu0 %v682
      %v771 = vpop.f32.mrf.mxu0
      %v772 = vadd.f32 0.0, %v771
      %v773 = vpop.f32.mrf.mxu0
      %v774 = vadd.f32 0.0, %v773
      %775 = vmatprep.mubr.f32.mxu0 0.0
      %776 = vmatmul.mubr.f32.gmra.mxu0 %v685
      %v777 = vpop.f32.mrf.mxu0
      %v778 = vadd.f32 0.0, %v777
      %v779 = vpop.f32.mrf.mxu0
      %v780 = vadd.f32 0.0, %v779
      %781 = vmatprep.mubr.f32.mxu0 0.0
      %782 = vmatmul.mubr.f32.gmra.mxu0 %v688
      %v783 = vpop.f32.mrf.mxu0
      %v784 = vadd.f32 0.0, %v783
      %v785 = vpop.f32.mrf.mxu0
      %v786 = vadd.f32 0.0, %v785
      %787 = vmatprep.mubr.f32.mxu0 0.0
      %788 = vmatmul.mubr.f32.gmra.mxu0 %v691
      %v789 = vpop.f32.mrf.mxu0
      %v790 = vadd.f32 0.0, %v789
      %v791 = vpop.f32.mrf.mxu0
      %v792 = vadd.f32 0.0, %v791
      %793 = vdwg.mxu0
      %v794 = vmul.f32 %v760, %v664
      %v795 = vmul.f32 %v762, %v665
      %v796 = vmul.f32 %v766, %v666
      %v797 = vmul.f32 %v768, %v667
      %v798 = vadd.f32 %v794, %v796
      %v799 = vrot.slane %v798, 4
      %v800 = vadd.f32 %v798, %v799
      %v801 = vrot.slane %v800, 2
      %v802 = vadd.f32 %v800, %v801
      %v803 = vrot.slane %v802, 1
      %v804 = vadd.f32 %v802, %v803
      %v805 = vadd.f32 %v795, %v797
      %v806 = vrot.slane %v805, 4
      %v807 = vadd.f32 %v805, %v806
      %v808 = vrot.slane %v807, 2
      %v809 = vadd.f32 %v807, %v808
      %v810 = vrot.slane %v809, 1
      %v811 = vadd.f32 %v809, %v810
      %v814 = vcombine.low %v804, %v811
      %v816 = vunpack.c.l.s4 1966171168
      %v817 = vunpack.c.0.s8 %v816
      %v818 = vlaneseq
      %v819 = vshrl.u32 %v818, 7
      %v820 = vsub.s32 %v817, %v819
      %v821 = vrot.slane %v814, %v820
      %v823 = vunpack.c.l.s4 1966171168
      %v824 = vunpack.c.0.s8 %v823
      %v825 = vlaneseq
      %v826 = vshrl.u32 %v825, 7
      %v827 = vsub.s32 %v824, %v826
      %v828 = vrot.slane %v821, %v827
      %s830 = scalar_lea.vmem %s282, 1
      %831 = vst.msk [vmem:[%s830] ss:$4 sm:$0x3] %vm536, %v828
      %v832 = vmul.f32 %v772, %v664
      %v833 = vmul.f32 %v774, %v665
      %v834 = vmul.f32 %v778, %v666
      %v835 = vmul.f32 %v780, %v667
      %v836 = vadd.f32 %v832, %v834
      %v837 = vrot.slane %v836, 4
      %v838 = vadd.f32 %v836, %v837
      %v839 = vrot.slane %v838, 2
      %v840 = vadd.f32 %v838, %v839
      %v841 = vrot.slane %v840, 1
      %v842 = vadd.f32 %v840, %v841
      %v843 = vadd.f32 %v833, %v835
      %v844 = vrot.slane %v843, 4
      %v845 = vadd.f32 %v843, %v844
      %v846 = vrot.slane %v845, 2
      %v847 = vadd.f32 %v845, %v846
      %v848 = vrot.slane %v847, 1
      %v849 = vadd.f32 %v847, %v848
      %v852 = vcombine.low %v842, %v849
      %v854 = vunpack.c.l.s4 1966171168
      %v855 = vunpack.c.0.s8 %v854
      %v856 = vlaneseq
      %v857 = vshrl.u32 %v856, 7
      %v858 = vsub.s32 %v855, %v857
      %v859 = vrot.slane %v852, %v858
      %v861 = vunpack.c.l.s4 1966171168
      %v862 = vunpack.c.0.s8 %v861
      %v863 = vlaneseq
      %v864 = vshrl.u32 %v863, 7
      %v865 = vsub.s32 %v862, %v864
      %v866 = vrot.slane %v859, %v865
      %s868 = scalar_lea.vmem %s292, 1
      %869 = vst.msk [vmem:[%s868] ss:$4 sm:$0x3] %vm536, %v866
      %v870 = vmul.f32 %v784, %v664
      %v871 = vmul.f32 %v786, %v665
      %v872 = vmul.f32 %v790, %v666
      %v873 = vmul.f32 %v792, %v667
      %v874 = vadd.f32 %v870, %v872
      %v875 = vrot.slane %v874, 4
      %v876 = vadd.f32 %v874, %v875
      %v877 = vrot.slane %v876, 2
      %v878 = vadd.f32 %v876, %v877
      %v879 = vrot.slane %v878, 1
      %v880 = vadd.f32 %v878, %v879
      %v881 = vadd.f32 %v871, %v873
      %v882 = vrot.slane %v881, 4
      %v883 = vadd.f32 %v881, %v882
      %v884 = vrot.slane %v883, 2
      %v885 = vadd.f32 %v883, %v884
      %v886 = vrot.slane %v885, 1
      %v887 = vadd.f32 %v885, %v886
      %v890 = vcombine.low %v880, %v887
      %v892 = vunpack.c.l.s4 1966171168
      %v893 = vunpack.c.0.s8 %v892
      %v894 = vlaneseq
      %v895 = vshrl.u32 %v894, 7
      %v896 = vsub.s32 %v893, %v895
      %v897 = vrot.slane %v890, %v896
      %v899 = vunpack.c.l.s4 1966171168
      %v900 = vunpack.c.0.s8 %v899
      %v901 = vlaneseq
      %v902 = vshrl.u32 %v901, 7
      %v903 = vsub.s32 %v900, %v902
      %v904 = vrot.slane %v897, %v903
      %s906 = scalar_lea.vmem %s302, 1
      %907 = vst.msk [vmem:[%s906] ss:$4 sm:$0x3] %vm536, %v904
      %v908 = vlaneseq
      %v909 = vshrl.u32 %v908, 7
      %v910 = vsub.s32 2, %v909
      %v911 = vrot.slane %v310, %v910
      %v912 = vlaneseq
      %v913 = vshrl.u32 %v912, 7
      %v914 = vsub.s32 6, %v913
      %v915 = vrot.slane %v310, %v914
      %v916 = vlaneseq
      %v917 = vshrl.u32 %v916, 7
      %v918 = vsub.s32 2, %v917
      %v919 = vrot.slane %v911, %v918
      %v920 = vlaneseq
      %v921 = vshrl.u32 %v920, 7
      %v922 = vsub.s32 2, %v921
      %v923 = vrot.slane %v915, %v922
      %vm924 = vcmp.eq.s32.totalorder %v313, %v919
      %vm925 = vcmp.eq.s32.totalorder %v313, %v923
      %vm926 = vcmp.eq.s32.totalorder %v314, %v919
      %vm927 = vcmp.eq.s32.totalorder %v314, %v923
      %v928 = vsel %vm924, 1, 0
      %v929 = vsel %vm925, 1, 0
      %v930 = vsel %vm926, 1, 0
      %v931 = vsel %vm927, 1, 0
      %v932 = vcvt.s32.f32 %v928
      %v933 = vcvt.s32.f32 %v929
      %v934 = vcvt.s32.f32 %v930
      %v935 = vcvt.s32.f32 %v931
      %v936 = vlaneseq
      %v937 = vshrl.u32 %v936, 7
      %v938 = vsub.s32 2, %v937
      %v939 = vrot.slane %v311, %v938
      %v940 = vlaneseq
      %v941 = vshrl.u32 %v940, 7
      %v942 = vsub.s32 6, %v941
      %v943 = vrot.slane %v311, %v942
      %v944 = vlaneseq
      %v945 = vshrl.u32 %v944, 7
      %v946 = vsub.s32 2, %v945
      %v947 = vrot.slane %v939, %v946
      %v948 = vlaneseq
      %v949 = vshrl.u32 %v948, 7
      %v950 = vsub.s32 2, %v949
      %v951 = vrot.slane %v943, %v950
      %vm952 = vcmp.eq.s32.totalorder %v313, %v947
      %vm953 = vcmp.eq.s32.totalorder %v313, %v951
      %vm954 = vcmp.eq.s32.totalorder %v314, %v947
      %vm955 = vcmp.eq.s32.totalorder %v314, %v951
      %v956 = vsel %vm952, 1, 0
      %v957 = vsel %vm953, 1, 0
      %v958 = vsel %vm954, 1, 0
      %v959 = vsel %vm955, 1, 0
      %v960 = vcvt.s32.f32 %v956
      %v961 = vcvt.s32.f32 %v957
      %v962 = vcvt.s32.f32 %v958
      %v963 = vcvt.s32.f32 %v959
      %s964 = scalar_lea.vmem %s273, 96
      %v965 = vld [vmem:[%s964] sm:$0xff]
      %v966 = vld [vmem:[%s964 + $0x8] sm:$0xff]
      %v967 = vld [vmem:[%s964 + $0x10] sm:$0xff]
      %v968 = vld [vmem:[%s964 + $0x18] sm:$0xff]
      %v969 = vld [vmem:[%s964 + $0x20] sm:$0xff]
      %v970 = vld [vmem:[%s964 + $0x28] sm:$0xff]
      %v972 = vsel %vm377, %v965, 0
      %v975 = vsel %vm377, %v966, 0
      %v978 = vsel %vm377, %v967, 0
      %v981 = vsel %vm377, %v968, 0
      %v984 = vsel %vm377, %v969, 0
      %v987 = vsel %vm377, %v970, 0
      %989 = vmatprep.subr.mxu0 0.0
      %990 = vmatpush1.msra.mxu0 0.0
      %991 = vmatprep.subr.mxu0 0.0
      %992 = vmatpush1.msra.mxu0 0.0
      %993 = vmatprep.subr.mxu0 0.0
      %994 = vmatpush1.msra.mxu0 0.0
      %995 = vmatprep.subr.mxu0 0.0
      %996 = vmatpush1.msra.mxu0 0.0
      %997 = vmatprep.subr.mxu0 0.0
      %998 = vmatpush1.msra.mxu0 0.0
      %999 = vmatprep.subr.mxu0 0.0
      %1000 = vmatpush1.msra.mxu0 0.0
      %1001 = vmatprep.subr.mxu0 0.0
      %1002 = vmatpush1.msra.mxu0 0.0
      %1003 = vmatprep.subr.mxu0 0.0
      %1004 = vmatpush1.msra.mxu0 0.0
      %1005 = vmatprep.subr.mxu0 0.0
      %1006 = vmatpush1.msra.mxu0 0.0
      %1007 = vmatprep.subr.mxu0 0.0
      %1008 = vmatpush1.msra.mxu0 0.0
      %1009 = vmatprep.subr.mxu0 0.0
      %1010 = vmatpush1.msra.mxu0 0.0
      %1011 = vmatprep.subr.mxu0 0.0
      %1012 = vmatpush1.msra.mxu0 0.0
      %1013 = vmatprep.subr.mxu0 0.0
      %1014 = vmatpush1.msra.mxu0 0.0
      %1015 = vmatprep.subr.mxu0 0.0
      %1016 = vmatpush1.msra.mxu0 0.0
      %1017 = vmatprep.subr.mxu0 %v935
      %1018 = vmatpush1.msra.mxu0 %v934
      %1019 = vmatprep.subr.mxu0 %v933
      %1020 = vmatpush1.msra.mxu0 %v932
      %1021 = vmatprep.subr.mxu0 0.0
      %1022 = vmatpush2.msra.mxu0 0.0
      %1023 = vmatprep.subr.mxu0 0.0
      %1024 = vmatpush2.msra.mxu0 0.0
      %1025 = vmatprep.subr.mxu0 0.0
      %1026 = vmatpush2.msra.mxu0 0.0
      %1027 = vmatprep.subr.mxu0 0.0
      %1028 = vmatpush2.msra.mxu0 0.0
      %1029 = vmatprep.subr.mxu0 0.0
      %1030 = vmatpush2.msra.mxu0 0.0
      %1031 = vmatprep.subr.mxu0 0.0
      %1032 = vmatpush2.msra.mxu0 0.0
      %1033 = vmatprep.subr.mxu0 0.0
      %1034 = vmatpush2.msra.mxu0 0.0
      %1035 = vmatprep.subr.mxu0 0.0
      %1036 = vmatpush2.msra.mxu0 0.0
      %1037 = vmatprep.subr.mxu0 0.0
      %1038 = vmatpush2.msra.mxu0 0.0
      %1039 = vmatprep.subr.mxu0 0.0
      %1040 = vmatpush2.msra.mxu0 0.0
      %1041 = vmatprep.subr.mxu0 0.0
      %1042 = vmatpush2.msra.mxu0 0.0
      %1043 = vmatprep.subr.mxu0 0.0
      %1044 = vmatpush2.msra.mxu0 0.0
      %1045 = vmatprep.subr.mxu0 0.0
      %1046 = vmatpush2.msra.mxu0 0.0
      %1047 = vmatprep.subr.mxu0 0.0
      %1048 = vmatpush2.msra.mxu0 0.0
      %1049 = vmatprep.subr.mxu0 0.0
      %1050 = vmatpush2.msra.mxu0 0.0
      %1051 = vmatprep.subr.mxu0 0.0
      %1052 = vmatpush2.msra.mxu0 0.0
      %1053 = vmatprep.mubr.f32.mxu0 0.0
      %1054 = vmatmul.mubr.f32.gmra.mxu0 %v972
      %v1055 = vpop.f32.mrf.mxu0
      %v1056 = vadd.f32 0.0, %v1055
      %v1057 = vpop.f32.mrf.mxu0
      %v1058 = vadd.f32 0.0, %v1057
      %1059 = vmatprep.mubr.f32.mxu0 0.0
      %1060 = vmatmul.mubr.f32.gmra.mxu0 %v975
      %v1061 = vpop.f32.mrf.mxu0
      %v1062 = vadd.f32 0.0, %v1061
      %v1063 = vpop.f32.mrf.mxu0
      %v1064 = vadd.f32 0.0, %v1063
      %1065 = vmatprep.mubr.f32.mxu0 0.0
      %1066 = vmatmul.mubr.f32.gmra.mxu0 %v978
      %v1067 = vpop.f32.mrf.mxu0
      %v1068 = vadd.f32 0.0, %v1067
      %v1069 = vpop.f32.mrf.mxu0
      %v1070 = vadd.f32 0.0, %v1069
      %1071 = vmatprep.mubr.f32.mxu0 0.0
      %1072 = vmatmul.mubr.f32.gmra.mxu0 %v981
      %v1073 = vpop.f32.mrf.mxu0
      %v1074 = vadd.f32 0.0, %v1073
      %v1075 = vpop.f32.mrf.mxu0
      %v1076 = vadd.f32 0.0, %v1075
      %1077 = vmatprep.mubr.f32.mxu0 0.0
      %1078 = vmatmul.mubr.f32.gmra.mxu0 %v984
      %v1079 = vpop.f32.mrf.mxu0
      %v1080 = vadd.f32 0.0, %v1079
      %v1081 = vpop.f32.mrf.mxu0
      %v1082 = vadd.f32 0.0, %v1081
      %1083 = vmatprep.mubr.f32.mxu0 0.0
      %1084 = vmatmul.mubr.f32.gmra.mxu0 %v987
      %v1085 = vpop.f32.mrf.mxu0
      %v1086 = vadd.f32 0.0, %v1085
      %v1087 = vpop.f32.mrf.mxu0
      %v1088 = vadd.f32 0.0, %v1087
      %1089 = vdwg.mxu0
      %v1090 = vmul.f32 %v1056, %v960
      %v1091 = vmul.f32 %v1058, %v961
      %v1092 = vmul.f32 %v1062, %v962
      %v1093 = vmul.f32 %v1064, %v963
      %v1094 = vadd.f32 %v1090, %v1092
      %v1095 = vrot.slane %v1094, 4
      %v1096 = vadd.f32 %v1094, %v1095
      %v1097 = vrot.slane %v1096, 2
      %v1098 = vadd.f32 %v1096, %v1097
      %v1099 = vrot.slane %v1098, 1
      %v1100 = vadd.f32 %v1098, %v1099
      %v1101 = vadd.f32 %v1091, %v1093
      %v1102 = vrot.slane %v1101, 4
      %v1103 = vadd.f32 %v1101, %v1102
      %v1104 = vrot.slane %v1103, 2
      %v1105 = vadd.f32 %v1103, %v1104
      %v1106 = vrot.slane %v1105, 1
      %v1107 = vadd.f32 %v1105, %v1106
      %v1110 = vcombine.low %v1100, %v1107
      %v1112 = vunpack.c.l.s4 1966171168
      %v1113 = vunpack.c.0.s8 %v1112
      %v1114 = vlaneseq
      %v1115 = vshrl.u32 %v1114, 7
      %v1116 = vsub.s32 %v1113, %v1115
      %v1117 = vrot.slane %v1110, %v1116
      %v1119 = vunpack.c.l.s4 1966171168
      %v1120 = vunpack.c.0.s8 %v1119
      %v1121 = vlaneseq
      %v1122 = vshrl.u32 %v1121, 7
      %v1123 = vsub.s32 %v1120, %v1122
      %v1124 = vrot.slane %v1117, %v1123
      %s1126 = scalar_lea.vmem %s282, 2
      %1127 = vst.msk [vmem:[%s1126] ss:$4 sm:$0x3] %vm536, %v1124
      %v1128 = vmul.f32 %v1068, %v960
      %v1129 = vmul.f32 %v1070, %v961
      %v1130 = vmul.f32 %v1074, %v962
      %v1131 = vmul.f32 %v1076, %v963
      %v1132 = vadd.f32 %v1128, %v1130
      %v1133 = vrot.slane %v1132, 4
      %v1134 = vadd.f32 %v1132, %v1133
      %v1135 = vrot.slane %v1134, 2
      %v1136 = vadd.f32 %v1134, %v1135
      %v1137 = vrot.slane %v1136, 1
      %v1138 = vadd.f32 %v1136, %v1137
      %v1139 = vadd.f32 %v1129, %v1131
      %v1140 = vrot.slane %v1139, 4
      %v1141 = vadd.f32 %v1139, %v1140
      %v1142 = vrot.slane %v1141, 2
      %v1143 = vadd.f32 %v1141, %v1142
      %v1144 = vrot.slane %v1143, 1
      %v1145 = vadd.f32 %v1143, %v1144
      %v1148 = vcombine.low %v1138, %v1145
      %v1150 = vunpack.c.l.s4 1966171168
      %v1151 = vunpack.c.0.s8 %v1150
      %v1152 = vlaneseq
      %v1153 = vshrl.u32 %v1152, 7
      %v1154 = vsub.s32 %v1151, %v1153
      %v1155 = vrot.slane %v1148, %v1154
      %v1157 = vunpack.c.l.s4 1966171168
      %v1158 = vunpack.c.0.s8 %v1157
      %v1159 = vlaneseq
      %v1160 = vshrl.u32 %v1159, 7
      %v1161 = vsub.s32 %v1158, %v1160
      %v1162 = vrot.slane %v1155, %v1161
      %s1164 = scalar_lea.vmem %s292, 2
      %1165 = vst.msk [vmem:[%s1164] ss:$4 sm:$0x3] %vm536, %v1162
      %v1166 = vmul.f32 %v1080, %v960
      %v1167 = vmul.f32 %v1082, %v961
      %v1168 = vmul.f32 %v1086, %v962
      %v1169 = vmul.f32 %v1088, %v963
      %v1170 = vadd.f32 %v1166, %v1168
      %v1171 = vrot.slane %v1170, 4
      %v1172 = vadd.f32 %v1170, %v1171
      %v1173 = vrot.slane %v1172, 2
      %v1174 = vadd.f32 %v1172, %v1173
      %v1175 = vrot.slane %v1174, 1
      %v1176 = vadd.f32 %v1174, %v1175
      %v1177 = vadd.f32 %v1167, %v1169
      %v1178 = vrot.slane %v1177, 4
      %v1179 = vadd.f32 %v1177, %v1178
      %v1180 = vrot.slane %v1179, 2
      %v1181 = vadd.f32 %v1179, %v1180
      %v1182 = vrot.slane %v1181, 1
      %v1183 = vadd.f32 %v1181, %v1182
      %v1186 = vcombine.low %v1176, %v1183
      %v1188 = vunpack.c.l.s4 1966171168
      %v1189 = vunpack.c.0.s8 %v1188
      %v1190 = vlaneseq
      %v1191 = vshrl.u32 %v1190, 7
      %v1192 = vsub.s32 %v1189, %v1191
      %v1193 = vrot.slane %v1186, %v1192
      %v1195 = vunpack.c.l.s4 1966171168
      %v1196 = vunpack.c.0.s8 %v1195
      %v1197 = vlaneseq
      %v1198 = vshrl.u32 %v1197, 7
      %v1199 = vsub.s32 %v1196, %v1198
      %v1200 = vrot.slane %v1193, %v1199
      %s1202 = scalar_lea.vmem %s302, 2
      %1203 = vst.msk [vmem:[%s1202] ss:$4 sm:$0x3] %vm536, %v1200
      %s1204 = smul.u32 2, %s21
      %p1205 = scmp.lt.s32.totalorder %s20, 1
      %s1206 = scalar_select %p1205, %s20, 1
      %p1207 = scmp.lt.s32.totalorder %s1204, 1
      %s1208 = scalar_select %p1207, %s1204, 1
      %s1209 = smul.addr %s1206, 2
      %s1210 = sadd.s32 %s1208, %s1209
      %s1211 = smul.addr %s1210, 4
      %s1212 = scalar_lea.vmem %s2, %s1211
      %s1213 = smul.u32 2, %s21
      %p1214 = scmp.lt.s32.totalorder %s20, 1
      %s1215 = scalar_select %p1214, %s20, 1
      %p1216 = scmp.lt.s32.totalorder %s1213, 1
      %s1217 = scalar_select %p1216, %s1213, 1
      %s1218 = smul.addr %s1215, 2
      %s1219 = sadd.s32 %s1217, %s1218
      %s1220 = smul.addr %s1219, 4
      %s1221 = scalar_lea.vmem %s3, %s1220
      %s1222 = smul.u32 2, %s21
      %p1223 = scmp.lt.s32.totalorder %s20, 1
      %s1224 = scalar_select %p1223, %s20, 1
      %p1225 = scmp.lt.s32.totalorder %s1222, 1
      %s1226 = scalar_select %p1225, %s1222, 1
      %s1227 = smul.addr %s1224, 2
      %s1228 = sadd.s32 %s1226, %s1227
      %s1229 = smul.addr %s1228, 4
      %s1230 = scalar_lea.vmem %s4, %s1229
      // Predicated region
      $region29: #{intensity_transformation.1} parent=27 // pred_check
        %p1231 = pneg %p102
      $region30: #{intensity_transformation.1} parent=27 // pred_check_branch
        %1233 = sbr.rel (%p1231) target = $region32
      $region31: #{intensity_transformation.1} parent=27 // pred_region
        %s1234 = smul.u32 2, %s21
      $region32: #{intensity_transformation.1} parent=27 // pred_fallthru
        _
      // Predicated region
      $region33: #{intensity_transformation.1} parent=27 // pred_check
        %p1235 = pneg %p130
      $region34: #{intensity_transformation.1} parent=27 // pred_check_branch
        %1237 = sbr.rel (%p1235) target = $region36
      $region35: #{intensity_transformation.1} parent=27 // pred_region
        %s1238 = smul.u32 2, %s21
      $region36: #{intensity_transformation.1} parent=27 // pred_fallthru
        _
      // Predicated region
      $region37: #{intensity_transformation.1} parent=27 // pred_check
        %p1239 = pneg %p158
      $region38: #{intensity_transformation.1} parent=27 // pred_check_branch
        %1241 = sbr.rel (%p1239) target = $region40
      $region39: #{intensity_transformation.1} parent=27 // pred_region
        %s1242 = smul.u32 2, %s21
      $region40: #{intensity_transformation.1} parent=27 // pred_fallthru
        _
    $region28: #{intensity_transformation.1} parent=5 // pred_fallthru
      _
    %p1243 = scmp.le.s32.totalorder 2, %s11
    // Predicated region
    $region41: #{intensity_transformation.1} parent=5 // pred_check
      %p1244 = pneg %p1243
    $region42: #{intensity_transformation.1} parent=5 // pred_check_branch
      %1246 = sbr.rel (%p1244) target = $region44
    $region43: #{intensity_transformation.1} parent=5 // pred_region
      %s1247 = ssub.s32 %s11, 2
      // Predicated region
      $region45: #{intensity_transformation.1} parent=43 // pred_check
        %p1248 = pneg %p108
      $region46: #{intensity_transformation.1} parent=43 // pred_check_branch
        %1250 = sbr.rel (%p1248) target = $region48
      $region47: #{intensity_transformation.1} parent=43 // pred_region
        %s1251 = smul.u32 2, %s23
        %p1252 = scmp.lt.s32.totalorder %s22, 1
        %s1253 = scalar_select %p1252, %s22, 1
        %p1254 = scmp.lt.s32.totalorder %s1251, 1
        %s1255 = scalar_select %p1254, %s1251, 1
        %s1256 = smul.addr %s1253, 2
        %s1257 = sadd.s32 %s1255, %s1256
        %s1258 = smul.addr %s1257, 4
        %s1259 = scalar_lea.vmem %s2, %s1258
      $region48: #{intensity_transformation.1} parent=43 // pred_fallthru
        _
      // Predicated region
      $region49: #{intensity_transformation.1} parent=43 // pred_check
        %p1260 = pneg %p136
      $region50: #{intensity_transformation.1} parent=43 // pred_check_branch
        %1262 = sbr.rel (%p1260) target = $region52
      $region51: #{intensity_transformation.1} parent=43 // pred_region
        %s1263 = smul.u32 2, %s23
        %p1264 = scmp.lt.s32.totalorder %s22, 1
        %s1265 = scalar_select %p1264, %s22, 1
        %p1266 = scmp.lt.s32.totalorder %s1263, 1
        %s1267 = scalar_select %p1266, %s1263, 1
        %s1268 = smul.addr %s1265, 2
        %s1269 = sadd.s32 %s1267, %s1268
        %s1270 = smul.addr %s1269, 4
        %s1271 = scalar_lea.vmem %s3, %s1270
      $region52: #{intensity_transformation.1} parent=43 // pred_fallthru
        _
      // Predicated region
      $region53: #{intensity_transformation.1} parent=43 // pred_check
        %p1272 = pneg %p164
      $region54: #{intensity_transformation.1} parent=43 // pred_check_branch
        %1274 = sbr.rel (%p1272) target = $region56
      $region55: #{intensity_transformation.1} parent=43 // pred_region
        %s1275 = smul.u32 2, %s23
        %p1276 = scmp.lt.s32.totalorder %s22, 1
        %s1277 = scalar_select %p1276, %s22, 1
        %p1278 = scmp.lt.s32.totalorder %s1275, 1
        %s1279 = scalar_select %p1278, %s1275, 1
        %s1280 = smul.addr %s1277, 2
        %s1281 = sadd.s32 %s1279, %s1280
        %s1282 = smul.addr %s1281, 4
        %s1283 = scalar_lea.vmem %s4, %s1282
      $region56: #{intensity_transformation.1} parent=43 // pred_fallthru
        _
    $region44: #{intensity_transformation.1} parent=5 // pred_fallthru
      _
  $region6: #{intensity_transformation.1} parent=0 // loop_footer
    %s15 = sadd.s32 1, %s11
  $region7: #{intensity_transformation.1} parent=0 // loop_footer_branch
    %10 = sbr.rel target = $region3
  $region8: #{intensity_transformation.1} parent=0 // loop_exit
    _

</llo_original>
